<compile_context>
chip_gen: v7x
topology: tpu7x:2x2x1
jax: 0.10.0
libtpu: 0.0.40
codegen_flags: <defaults>
</compile_context>

<pallas_src>
import jax
import jax.numpy as jnp
from jax.experimental import pallas as pl
from jax.experimental.pallas import tpu as pltpu


def _cdiv(a, b):
    return -(-a // b)


def _make_tversky_kernel(fold, acc_rows):
    """Builds the per-(batch, row-group) partial-sum kernel.

    x_ref, t_ref : (2, TL, 128) blocks (batch dim squeezed), channel 0 = N,
                   channel 1 = P.
    o_ref        : (3, acc_rows, 128) per-(b, p) partials (TP, FP, FN rows).
    acc_ref      : (3, acc_rows, 128) VMEM accumulator, resident across the
                   innermost ("arbitrary") grid axis.
    """

    def kernel(x_ref, t_ref, o_ref, acc_ref):
        r = pl.program_id(2)

        @pl.when(r == 0)
        def _init():
            acc_ref[...] = jnp.zeros_like(acc_ref)

        def _fold(prod):
            # (TL, 128) -> (8, 128) via same-lane/same-sublane VPU adds only
            # (the reshape splits the sublane axis at vreg-tile boundaries,
            # so it is layout-free; no XLU work in the hot loop).
            if fold:
                return prod.reshape(-1, acc_rows, 128).sum(axis=0)
            return prod

        # Ordered to keep few large f32 temporaries live at once.
        xP = x_ref[1].astype(jnp.float32)
        tP = t_ref[1].astype(jnp.float32)
        tN = t_ref[0].astype(jnp.float32)
        # sigmoid(x) == 0.5 * tanh(0.5 * x) + 0.5  -> single EUP op / element.
        sP = 0.5 * jnp.tanh(0.5 * xP) + 0.5
        acc_ref[0] += _fold(sP * tP)   # TP partial
        acc_ref[1] += _fold(sP * tN)   # FP partial

        xN = x_ref[0].astype(jnp.float32)
        sN = 0.5 * jnp.tanh(0.5 * xN) + 0.5
        acc_ref[2] += _fold(tP * sN)   # FN partial

        @pl.when(r == pl.num_programs(2) - 1)
        def _finalize():
            o_ref[...] = acc_ref[...]

    return kernel


def tversky_loss(inputs, targets, smooth=1.0, alpha=0.2, beta=0.8,
                 _max_rows_override=None):
    """inputs, targets: (B, C, H, W) with C >= 2 (channel 0 = negative,
    channel 1 = positive). Returns scalar f32 loss = 1 - Tversky, matching the
    PyTorch module's forward.

    `_max_rows_override` is a test hook that caps the row tile (forces the
    multi-step reduction path on small images)."""
    B, C, H, W = inputs.shape
    assert C >= 2, "binary one-hot expects at least 2 channels"
    assert targets.shape[0] == B and targets.shape[2:] == (H, W)
    assert targets.shape[1] >= 2

    # Only channels 0/1 are read by the loss; don't stream the rest.
    if C != 2:
        inputs = inputs[:, :2]
    if targets.shape[1] != 2:
        targets = targets[:, :2]
    C = 2

    in_item = jnp.dtype(inputs.dtype).itemsize
    tg_item = jnp.dtype(targets.dtype).itemsize
    # Sublane granule of the row tile: 8 for f32, 16 for bf16, 32 for int8.
    sub = max(8, 32 // min(in_item, tg_item))

    # Device-aware VMEM budget (v7x has 64 MiB/TC vs 128 MiB on v5e/v6e).
    try:
        info = pltpu.get_tpu_info()
        vmem_cap = int(getattr(info, "vmem_capacity_bytes", 64 * 1024 * 1024))
    except Exception:  # not on TPU / API unavailable -> conservative default
        vmem_cap = 64 * 1024 * 1024

    # Budget for the double-buffered input/target slabs (leave ~2x headroom
    # for in-kernel f32 temporaries and compiler scratch).
    stream_budget = min(vmem_cap // 3, 32 * 1024 * 1024)
    bytes_per_row = 2 * C * 128 * (in_item + tg_item)  # 2 buffers, both streams
    max_tl = max(sub, stream_budget // bytes_per_row)
    if _max_rows_override is not None:
        max_tl = max(sub, int(_max_rows_override))

    # Lane-dense layout: flatten (H, W) -> rows of 128 lanes.
    N = H * W
    L = _cdiv(N, 128)

    # Split the row range into 2 parallel groups when the batch axis alone
    # cannot feed both v7x TensorCores (odd B). Harmless elsewhere.
    NP = 2 if (B % 2 == 1 and L > sub) else 1

    if NP == 1 and L <= max_tl:
        num_chunks, TL = 1, L           # full-extent block (always legal)
    else:
        num_chunks = _cdiv(L, max_tl)
        num_chunks = _cdiv(num_chunks, NP) * NP
        TL = _cdiv(_cdiv(L, num_chunks), sub) * sub
    L_pad = num_chunks * TL
    R = num_chunks // NP

    fold = (TL % 8 == 0)
    AH = 8 if fold else TL

    def _prep(arr):
        flat = arr.reshape(B, C, N)
        if L_pad * 128 != N:
            # Zero padding is exact: every TP/FP/FN term has a target factor,
            # and padded targets are 0.
            flat = jnp.pad(flat, ((0, 0), (0, 0), (0, L_pad * 128 - N)))
        return flat.reshape(B, C, L_pad, 128)

    x = _prep(inputs)
    t = _prep(targets)

    kernel = _make_tversky_kernel(fold, AH)

    # Both channels stay in the block -> one DMA stream per operand.
    op_spec = pl.BlockSpec((None, C, TL, 128),
                           lambda b, p, r: (b, 0, p * R + r, 0))
    out_spec = pl.BlockSpec((None, None, 3, AH, 128),
                            lambda b, p, r: (b, p, 0, 0, 0))

    vmem_limit = int(min(max(vmem_cap * 3 // 4, 32 * 1024 * 1024),
                         112 * 1024 * 1024))

    partials = pl.pallas_call(
        kernel,
        out_shape=jax.ShapeDtypeStruct((B, NP, 3, AH, 128), jnp.float32),
        grid_spec=pltpu.PrefetchScalarGridSpec(
            num_scalar_prefetch=0,
            grid=(B, NP, R),
            in_specs=[op_spec, op_spec],
            out_specs=out_spec,
            scratch_shapes=[pltpu.VMEM((3, AH, 128), jnp.float32)],
        ),
        compiler_params=pltpu.CompilerParams(
            dimension_semantics=("parallel", "parallel", "arbitrary"),
            vmem_limit_bytes=vmem_limit),
    )(x, t)

    # Tiny cross-lane combine + Tversky formula in JAX.
    tp = jnp.sum(partials[:, :, 0])
    fp = jnp.sum(partials[:, :, 1])
    fn = jnp.sum(partials[:, :, 2])
    tversky = (tp + smooth) / (tp + alpha * fp + beta * fn + smooth)
    return (1.0 - tversky).astype(jnp.float32)


def _reference(inputs, targets, smooth=1.0, alpha=0.2, beta=0.8):
    """Pure-JAX reference mirroring the PyTorch forward."""
    s = jax.nn.sigmoid(inputs.astype(jnp.float32))
    inputsN = s[:, 0, :, :].reshape(-1)
    targetsN = targets[:, 0, :, :].reshape(-1).astype(jnp.float32)
    inputsP = s[:, 1, :, :].reshape(-1)
    targetsP = targets[:, 1, :, :].reshape(-1).astype(jnp.float32)
    TP = jnp.sum(inputsP * targetsP)
    FP = jnp.sum(inputsP * targetsN)
    FN = jnp.sum(targetsP * inputsN)
    tversky = (TP + smooth) / (TP + alpha * FP + beta * FN + smooth)
    return 1.0 - tversky


if __name__ == "__main__":
    key = jax.random.PRNGKey(0)
    ks = jax.random.split(key, 6)

    # 1) Canonical small case: B=2, binary one-hot, 16x16 f32 logits.
    B, C, H, W = 2, 2, 16, 16
    inputs = jax.random.normal(ks[0], (B, C, H, W), dtype=jnp.float32)
    labels = jax.random.bernoulli(ks[1], 0.5, (B, H, W)).astype(jnp.float32)
    targets = jnp.stack([1.0 - labels, labels], axis=1)
    loss = jax.block_until_ready(tversky_loss(inputs, targets))
    ref = jax.block_until_ready(_reference(inputs, targets))
    assert jnp.allclose(loss, ref, atol=1e-5, rtol=1e-5), (loss, ref)

    # 2) bf16 logits, odd batch (exercises the extra parallel row-group axis
    #    for v7x's two TensorCores) and a zero-padded ragged tail.
    B2, H2, W2 = 1, 48, 48
    inputs2 = jax.random.normal(ks[2], (B2, C, H2, W2), dtype=jnp.bfloat16)
    labels2 = jax.random.bernoulli(ks[3], 0.5, (B2, H2, W2)).astype(jnp.float32)
    targets2 = jnp.stack([1.0 - labels2, labels2], axis=1)
    loss2 = jax.block_until_ready(tversky_loss(inputs2, targets2))
    ref2 = jax.block_until_ready(_reference(inputs2, targets2))
    assert jnp.allclose(loss2, ref2, atol=1e-5, rtol=1e-5), (loss2, ref2)

    # 3) Forced small row tile: exercises the multi-step grid reduction,
    #    resident accumulator init/finalize and the VPU fold path.
    B3, H3, W3 = 2, 64, 64
    inputs3 = jax.random.normal(ks[4], (B3, C, H3, W3), dtype=jnp.float32)
    labels3 = jax.random.bernoulli(ks[5], 0.5, (B3, H3, W3)).astype(jnp.float32)
    targets3 = jnp.stack([1.0 - labels3, labels3], axis=1)
    loss3 = jax.block_until_ready(
        tversky_loss(inputs3, targets3, _max_rows_override=8))
    ref3 = jax.block_until_ready(_reference(inputs3, targets3))
    assert jnp.allclose(loss3, ref3, atol=1e-5, rtol=1e-5), (loss3, ref3)

    print("KERNEL_OK")
</pallas_src>

<mosaic_0001>
module attributes {stable_mosaic.version = 11 : i64} {
  func.func @kernel(%arg0: i32, %arg1: i32, %arg2: i32, %arg3: memref<1x2x2x128xf32, #tpu.memory_space<vmem>>, %arg4: memref<1x2x2x128xf32, #tpu.memory_space<vmem>>, %arg5: memref<1x1x3x2x128xf32, #tpu.memory_space<vmem>>, %arg6: memref<3x2x128xf32, #tpu.memory_space<vmem>>) attributes {dimension_semantics = [#tpu.dimension_semantics<parallel>, #tpu.dimension_semantics<parallel>, #tpu.dimension_semantics<arbitrary>], iteration_bounds = array<i64: 2, 1, 1>, scalar_prefetch = 0 : i64, scratch_operands = 1 : i64, tpu.core_type = #tpu.core_type<tc>, window_params = [{transform_indices = @transform_0, window_bounds = array<i64: 1, 2, 2, 128>}, {transform_indices = @transform_1, window_bounds = array<i64: 1, 2, 2, 128>}, {transform_indices = @transform_2, window_bounds = array<i64: 1, 1, 3, 2, 128>}]} {
    %c0_i32 = arith.constant 0 : i32
    %0 = arith.cmpi eq, %arg2, %c0_i32 : i32
    %1 = arith.extui %0 : i1 to i32
    %c0_i32_0 = arith.constant 0 : i32
    %2 = arith.cmpi ne, %1, %c0_i32_0 : i32
    scf.if %2 {
      %cst_39 = arith.constant 0.000000e+00 : f32
      %49 = vector.broadcast %cst_39 : f32 to vector<3x2x128xf32>
      %c0_40 = arith.constant 0 : index
      %c0_41 = arith.constant 0 : index
      %c0_42 = arith.constant 0 : index
      %50 = vector.load %arg6[%c0_40, %c0_41, %c0_42] : memref<3x2x128xf32, #tpu.memory_space<vmem>>, vector<3x2x128xf32>
      tpu.vector_store %arg6[%c0_40, %c0_41, %c0_42], %49 {strides = array<i32>} : memref<3x2x128xf32, #tpu.memory_space<vmem>>, vector<3x2x128xf32>,
    } else {
    }
    %c0 = arith.constant 0 : index
    %c1 = arith.constant 1 : index
    %c0_1 = arith.constant 0 : index
    %c0_2 = arith.constant 0 : index
    %3 = vector.load %arg3[%c0, %c1, %c0_1, %c0_2] : memref<1x2x2x128xf32, #tpu.memory_space<vmem>>, vector<1x1x2x128xf32>
    %4 = vector.shape_cast %3 : vector<1x1x2x128xf32> to vector<2x128xf32>
    %c0_3 = arith.constant 0 : index
    %c1_4 = arith.constant 1 : index
    %c0_5 = arith.constant 0 : index
    %c0_6 = arith.constant 0 : index
    %5 = vector.load %arg4[%c0_3, %c1_4, %c0_5, %c0_6] : memref<1x2x2x128xf32, #tpu.memory_space<vmem>>, vector<1x1x2x128xf32>
    %6 = vector.shape_cast %5 : vector<1x1x2x128xf32> to vector<2x128xf32>
    %c0_7 = arith.constant 0 : index
    %c0_8 = arith.constant 0 : index
    %c0_9 = arith.constant 0 : index
    %c0_10 = arith.constant 0 : index
    %7 = vector.load %arg4[%c0_7, %c0_8, %c0_9, %c0_10] : memref<1x2x2x128xf32, #tpu.memory_space<vmem>>, vector<1x1x2x128xf32>
    %8 = vector.shape_cast %7 : vector<1x1x2x128xf32> to vector<2x128xf32>
    %cst = arith.constant 5.000000e-01 : f32
    %9 = vector.broadcast %cst : f32 to vector<2x128xf32>
    %10 = arith.mulf %9, %4 : vector<2x128xf32>
    %11 = math.tanh %10 : vector<2x128xf32>
    %cst_11 = arith.constant 5.000000e-01 : f32
    %12 = vector.broadcast %cst_11 : f32 to vector<2x128xf32>
    %13 = arith.mulf %12, %11 : vector<2x128xf32>
    %cst_12 = arith.constant 5.000000e-01 : f32
    %14 = vector.broadcast %cst_12 : f32 to vector<2x128xf32>
    %15 = arith.addf %13, %14 : vector<2x128xf32>
    %c0_13 = arith.constant 0 : index
    %c0_14 = arith.constant 0 : index
    %c0_15 = arith.constant 0 : index
    %16 = vector.load %arg6[%c0_13, %c0_14, %c0_15] : memref<3x2x128xf32, #tpu.memory_space<vmem>>, vector<1x2x128xf32>
    %17 = vector.shape_cast %16 : vector<1x2x128xf32> to vector<2x128xf32>
    %18 = arith.mulf %15, %6 : vector<2x128xf32>
    %19 = arith.addf %17, %18 : vector<2x128xf32>
    %c0_16 = arith.constant 0 : index
    %c0_17 = arith.constant 0 : index
    %c0_18 = arith.constant 0 : index
    %20 = vector.load %arg6[%c0_16, %c0_17, %c0_18] : memref<3x2x128xf32, #tpu.memory_space<vmem>>, vector<1x2x128xf32>
    %21 = vector.shape_cast %20 : vector<1x2x128xf32> to vector<2x128xf32>
    %22 = vector.shape_cast %19 : vector<2x128xf32> to vector<1x2x128xf32>
    tpu.vector_store %arg6[%c0_16, %c0_17, %c0_18], %22 {strides = array<i32>} : memref<3x2x128xf32, #tpu.memory_space<vmem>>, vector<1x2x128xf32>,
    %c1_19 = arith.constant 1 : index
    %c0_20 = arith.constant 0 : index
    %c0_21 = arith.constant 0 : index
    %23 = vector.load %arg6[%c1_19, %c0_20, %c0_21] : memref<3x2x128xf32, #tpu.memory_space<vmem>>, vector<1x2x128xf32>
    %24 = vector.shape_cast %23 : vector<1x2x128xf32> to vector<2x128xf32>
    %25 = arith.mulf %15, %8 : vector<2x128xf32>
    %26 = arith.addf %24, %25 : vector<2x128xf32>
    %c1_22 = arith.constant 1 : index
    %c0_23 = arith.constant 0 : index
    %c0_24 = arith.constant 0 : index
    %27 = vector.load %arg6[%c1_22, %c0_23, %c0_24] : memref<3x2x128xf32, #tpu.memory_space<vmem>>, vector<1x2x128xf32>
    %28 = vector.shape_cast %27 : vector<1x2x128xf32> to vector<2x128xf32>
    %29 = vector.shape_cast %26 : vector<2x128xf32> to vector<1x2x128xf32>
    tpu.vector_store %arg6[%c1_22, %c0_23, %c0_24], %29 {strides = array<i32>} : memref<3x2x128xf32, #tpu.memory_space<vmem>>, vector<1x2x128xf32>,
    %c0_25 = arith.constant 0 : index
    %c0_26 = arith.constant 0 : index
    %c0_27 = arith.constant 0 : index
    %c0_28 = arith.constant 0 : index
    %30 = vector.load %arg3[%c0_25, %c0_26, %c0_27, %c0_28] : memref<1x2x2x128xf32, #tpu.memory_space<vmem>>, vector<1x1x2x128xf32>
    %31 = vector.shape_cast %30 : vector<1x1x2x128xf32> to vector<2x128xf32>
    %cst_29 = arith.constant 5.000000e-01 : f32
    %32 = vector.broadcast %cst_29 : f32 to vector<2x128xf32>
    %33 = arith.mulf %32, %31 : vector<2x128xf32>
    %34 = math.tanh %33 : vector<2x128xf32>
    %cst_30 = arith.constant 5.000000e-01 : f32
    %35 = vector.broadcast %cst_30 : f32 to vector<2x128xf32>
    %36 = arith.mulf %35, %34 : vector<2x128xf32>
    %cst_31 = arith.constant 5.000000e-01 : f32
    %37 = vector.broadcast %cst_31 : f32 to vector<2x128xf32>
    %38 = arith.addf %36, %37 : vector<2x128xf32>
    %c2 = arith.constant 2 : index
    %c0_32 = arith.constant 0 : index
    %c0_33 = arith.constant 0 : index
    %39 = vector.load %arg6[%c2, %c0_32, %c0_33] : memref<3x2x128xf32, #tpu.memory_space<vmem>>, vector<1x2x128xf32>
    %40 = vector.shape_cast %39 : vector<1x2x128xf32> to vector<2x128xf32>
    %41 = arith.mulf %6, %38 : vector<2x128xf32>
    %42 = arith.addf %40, %41 : vector<2x128xf32>
    %c2_34 = arith.constant 2 : index
    %c0_35 = arith.constant 0 : index
    %c0_36 = arith.constant 0 : index
    %43 = vector.load %arg6[%c2_34, %c0_35, %c0_36] : memref<3x2x128xf32, #tpu.memory_space<vmem>>, vector<1x2x128xf32>
    %44 = vector.shape_cast %43 : vector<1x2x128xf32> to vector<2x128xf32>
    %45 = vector.shape_cast %42 : vector<2x128xf32> to vector<1x2x128xf32>
    tpu.vector_store %arg6[%c2_34, %c0_35, %c0_36], %45 {strides = array<i32>} : memref<3x2x128xf32, #tpu.memory_space<vmem>>, vector<1x2x128xf32>,
    %c0_i32_37 = arith.constant 0 : i32
    %46 = arith.cmpi eq, %arg2, %c0_i32_37 : i32
    %47 = arith.extui %46 : i1 to i32
    %c0_i32_38 = arith.constant 0 : i32
    %48 = arith.cmpi ne, %47, %c0_i32_38 : i32
    scf.if %48 {
      %c0_39 = arith.constant 0 : index
      %c0_40 = arith.constant 0 : index
      %c0_41 = arith.constant 0 : index
      %49 = vector.load %arg6[%c0_39, %c0_40, %c0_41] : memref<3x2x128xf32, #tpu.memory_space<vmem>>, vector<3x2x128xf32>
      %c0_42 = arith.constant 0 : index
      %c0_43 = arith.constant 0 : index
      %c0_44 = arith.constant 0 : index
      %c0_45 = arith.constant 0 : index
      %c0_46 = arith.constant 0 : index
      %50 = vector.load %arg5[%c0_42, %c0_43, %c0_44, %c0_45, %c0_46] : memref<1x1x3x2x128xf32, #tpu.memory_space<vmem>>, vector<1x1x3x2x128xf32>
      %51 = vector.shape_cast %50 : vector<1x1x3x2x128xf32> to vector<3x2x128xf32>
      %52 = vector.shape_cast %49 : vector<3x2x128xf32> to vector<1x1x3x2x128xf32>
      tpu.vector_store %arg5[%c0_42, %c0_43, %c0_44, %c0_45, %c0_46], %52 {strides = array<i32>} : memref<1x1x3x2x128xf32, #tpu.memory_space<vmem>>, vector<1x1x3x2x128xf32>,
    } else {
    }
    return
  }
  func.func @transform_0(%arg0: i32, %arg1: i32, %arg2: i32) -> (i32, i32, i32, i32) {
    %c1_i32 = arith.constant 1 : i32
    %0 = arith.muli %arg1, %c1_i32 : i32
    %1 = arith.addi %0, %arg2 : i32
    %c0_i32 = arith.constant 0 : i32
    %c0_i32_0 = arith.constant 0 : i32
    %c0_i32_1 = arith.constant 0 : i32
    return %arg0, %c0_i32, %1, %c0_i32_0 : i32, i32, i32, i32
  }
  func.func @transform_1(%arg0: i32, %arg1: i32, %arg2: i32) -> (i32, i32, i32, i32) {
    %c1_i32 = arith.constant 1 : i32
    %0 = arith.muli %arg1, %c1_i32 : i32
    %1 = arith.addi %0, %arg2 : i32
    %c0_i32 = arith.constant 0 : i32
    %c0_i32_0 = arith.constant 0 : i32
    %c0_i32_1 = arith.constant 0 : i32
    return %arg0, %c0_i32, %1, %c0_i32_0 : i32, i32, i32, i32
  }
  func.func @transform_2(%arg0: i32, %arg1: i32, %arg2: i32) -> (i32, i32, i32, i32, i32) {
    %c0_i32 = arith.constant 0 : i32
    %c0_i32_0 = arith.constant 0 : i32
    %c0_i32_1 = arith.constant 0 : i32
    %c0_i32_2 = arith.constant 0 : i32
    return %arg0, %arg1, %c0_i32, %c0_i32_0, %c0_i32_1 : i32, i32, i32, i32, i32
  }
}

</mosaic_0001>

<llo_original>
// kernel: tpu_custom_call.1
$region0: #{tpu_custom_call.1}
  #allocation0 [shape = 'u32[]', space=smem, size = 0x4, offset = 0x4, fixed_abs, tag = 'smem constant byte address 0x4 - core index']
  #allocation1 [shape = 'u32[144,128]{1,0:T(1,128)}', space=vmem, size = 0x12000, scoped, tag = 'internal scratch']
  #allocation2 [shape = 'f32[3,2,128]{2,1,0:T(2,128)}', space=vmem, size = 0xc00, scoped, tag = 'scratch operand']
  %s0 = inlined_call_operand.hbm [shape: f32[2,2,2,128], index: 0, kind: input, shape index: {}]
  %s1 = inlined_call_operand.hbm [shape: f32[2,2,2,128], index: 1, kind: input, shape index: {}]
  %s2 = inlined_call_operand.hbm [shape: f32[2,1,3,2,128], index: 2, kind: output, shape index: {}]
  %s3 = sld [smem:[#allocation0]]
  $region57: #{tpu_custom_call.1} parent=0
    _
  %s5 = ssub.s32 1, %s3
  %s6 = scalar_select 0, %s5, %s3
  $region1: #{tpu_custom_call.1} parent=0
    #allocation3 [shape = 'u8[4096]{0}', space=vmem, size = 0x1000, scoped, tag = 'input window, operand 0']
    #allocation4 [shape = 's32[2]{0}', space=sflag, size = 0x8, scoped, tag = 'scoped memory for tpu_custom_call.1']
    #allocation5 [shape = 's32[2]{0}', space=sflag, size = 0x8, scoped, tag = 'scoped memory for tpu_custom_call.1']
    #allocation6 [shape = 'u8[4096]{0}', space=vmem, size = 0x1000, scoped, tag = 'input window, operand 1']
    #allocation7 [shape = 's32[2]{0}', space=sflag, size = 0x8, scoped, tag = 'scoped memory for tpu_custom_call.1']
    #allocation8 [shape = 'u8[6144]{0}', space=vmem, size = 0x1800, scoped, tag = 'output window, operand 0']
    %7 = vsyncpa [#allocation4], 0
    %s8 = scalar_lea.sflag [#allocation4], 1
    %9 = vsyncpa %s8, 0
    %10 = vsyncpa [#allocation7], 0
    %s11 = scalar_lea.sflag [#allocation7], 1
    %12 = vsyncpa %s11, 0
    %13 = vsyncpa [#allocation5], 0
    %s14 = scalar_lea.sflag [#allocation5], 1
    %15 = vsyncpa %s14, 0
    loop: start=0, step=1, limit=4
    $region2: #{tpu_custom_call.1} parent=1 // loop_pre_header
      _
    $region3: #{tpu_custom_call.1} parent=1 // loop_header
      %s17 = sphi 0, %s21
      %p18 = scmp.ge.s32.totalorder %s17, 4
      %s24 = sphi 0, %s43
      %s25 = sphi 0, %s39
      %s26 = sphi 0, %s35
      %s27 = sphi 0, %s24
      %s28 = sphi 0, %s25
      %s29 = sphi 0, %s26
      %s30 = sphi 0, %s27
      %s31 = sphi 0, %s28
      %s32 = sphi 0, %s29
      %s50 = sphi 0, %s52
      %s53 = sphi 0, %s50
      %s54 = sphi 0, %s53
      %s70 = sphi 0, %s54
      %s80 = sphi 0, %s82
      %s83 = sphi 0, %s80
      %s84 = sphi 0, %s83
      %s100 = sphi 0, %s84
      %s108 = sphi 0, %s110
      %s111 = sphi 0, %s108
      %s112 = sphi 0, %s111
      %s128 = sphi 0, %s112
    $region4: #{tpu_custom_call.1} parent=1 // loop_header_branch
      %20 = sbr.rel (%p18) target = $region8
    $region5: #{tpu_custom_call.1} parent=1 // loop_body
      %s22 = ssub.s32 %s17, 1
      %s23 = ssub.s32 %s17, 2
      %s33 = sadd.s32 1, %s26
      %p34 = scmp.ge.s32.totalorder %s33, 1
      %s35 = scalar_select %p34, 0, %s33
      %s36 = sadd.s32 1, %s25
      %s37 = scalar_select %p34, %s36, %s25
      %p38 = scmp.ge.s32.totalorder %s37, 1
      %s39 = scalar_select %p38, 0, %s37
      %s40 = sadd.s32 1, %s24
      %s41 = scalar_select %p38, %s40, %s24
      %p42 = scmp.ge.s32.totalorder %s41, 2
      %s43 = scalar_select %p42, 0, %s41
      %s44 = sadd.s32 %s25, %s26
      %s45 = sadd.s32 %s39, %s35
      %s46 = ssub.s32 %s24, %s43
      %s47 = ssub.s32 %s44, %s45
      %s48 = sor.u32 %s46, %s47
      %p49 = scmp.eq.s32.totalorder %s48, 0
      %s51 = sadd.s32 %s50, 1
      %s52 = scalar_select %p49, %s50, %s51
      %p55 = pneg %p49
      %p56 = scmp.eq.s32.totalorder %s17, 1
      %p57 = por %p55, %p56
      %p58 = scmp.ne.s32.totalorder %s50, %s53
      %p59 = scmp.eq.s32.totalorder %s17, 0
      %p60 = por %p58, %p59
      %p61 = scmp.ne.s32.totalorder %s50, %s53
      %p62 = scmp.eq.s32.totalorder %s22, 1
      %p63 = por %p61, %p62
      %p64 = scmp.ne.s32.totalorder %s53, %s54
      %p65 = scmp.eq.s32.totalorder %s22, 0
      %p66 = por %p64, %p65
      %p67 = scmp.ne.s32.totalorder %s53, %s54
      %p68 = scmp.eq.s32.totalorder %s23, 1
      %p69 = por %p67, %p68
      %p71 = scmp.ne.s32.totalorder %s54, %s70
      %p72 = scmp.eq.s32.totalorder %s23, 0
      %p73 = por %p71, %p72
      %s74 = sadd.s32 %s25, %s26
      %s75 = sadd.s32 %s39, %s35
      %s76 = ssub.s32 %s24, %s43
      %s77 = ssub.s32 %s74, %s75
      %s78 = sor.u32 %s76, %s77
      %p79 = scmp.eq.s32.totalorder %s78, 0
      %s81 = sadd.s32 %s80, 1
      %s82 = scalar_select %p79, %s80, %s81
      %p85 = pneg %p79
      %p86 = scmp.eq.s32.totalorder %s17, 1
      %p87 = por %p85, %p86
      %p88 = scmp.ne.s32.totalorder %s80, %s83
      %p89 = scmp.eq.s32.totalorder %s17, 0
      %p90 = por %p88, %p89
      %p91 = scmp.ne.s32.totalorder %s80, %s83
      %p92 = scmp.eq.s32.totalorder %s22, 1
      %p93 = por %p91, %p92
      %p94 = scmp.ne.s32.totalorder %s83, %s84
      %p95 = scmp.eq.s32.totalorder %s22, 0
      %p96 = por %p94, %p95
      %p97 = scmp.ne.s32.totalorder %s83, %s84
      %p98 = scmp.eq.s32.totalorder %s23, 1
      %p99 = por %p97, %p98
      %p101 = scmp.ne.s32.totalorder %s84, %s100
      %p102 = scmp.eq.s32.totalorder %s23, 0
      %p103 = por %p101, %p102
      %s104 = ssub.s32 %s24, %s43
      %s105 = ssub.s32 %s25, %s39
      %s106 = sor.u32 %s104, %s105
      %p107 = scmp.eq.s32.totalorder %s106, 0
      %s109 = sadd.s32 %s108, 1
      %s110 = scalar_select %p107, %s108, %s109
      %p113 = pneg %p107
      %p114 = scmp.eq.s32.totalorder %s17, 1
      %p115 = por %p113, %p114
      %p116 = scmp.ne.s32.totalorder %s108, %s111
      %p117 = scmp.eq.s32.totalorder %s17, 0
      %p118 = por %p116, %p117
      %p119 = scmp.ne.s32.totalorder %s108, %s111
      %p120 = scmp.eq.s32.totalorder %s22, 1
      %p121 = por %p119, %p120
      %p122 = scmp.ne.s32.totalorder %s111, %s112
      %p123 = scmp.eq.s32.totalorder %s22, 0
      %p124 = por %p122, %p123
      %p125 = scmp.ne.s32.totalorder %s111, %s112
      %p126 = scmp.eq.s32.totalorder %s23, 1
      %p127 = por %p125, %p126
      %p129 = scmp.ne.s32.totalorder %s112, %s128
      %p130 = scmp.eq.s32.totalorder %s23, 0
      %p131 = por %p129, %p130
      %p132 = scmp.le.s32.totalorder 1, %s17
      %p133 = scmp.lt.s32.totalorder %s17, 3
      %p134 = pnand %p132, %p133
      %p135 = pneg %p134
      // Predicated region
      $region9: #{tpu_custom_call.1} parent=5 // pred_check
        _
      $region10: #{tpu_custom_call.1} parent=5 // pred_check_branch
        %137 = sbr.rel (%p134) target = $region12
      $region11: #{tpu_custom_call.1} parent=5 // pred_region
        %s138 = ssub.s32 %s17, 1
      $region12: #{tpu_custom_call.1} parent=5 // pred_fallthru
        _
      %p139 = scmp.lt.s32.totalorder %s17, 2
      // Predicated region
      $region13: #{tpu_custom_call.1} parent=5 // pred_check
        %p140 = pneg %p139
      $region14: #{tpu_custom_call.1} parent=5 // pred_check_branch
        %142 = sbr.rel (%p140) target = $region16
      $region15: #{tpu_custom_call.1} parent=5 // pred_region
        // Predicated region
        $region17: #{tpu_custom_call.1} parent=15 // pred_check
          %p143 = pneg %p60
        $region18: #{tpu_custom_call.1} parent=15 // pred_check_branch
          %145 = sbr.rel (%p143) target = $region20
        $region19: #{tpu_custom_call.1} parent=15 // pred_region
          %s146 = sand.u32 %s50, 1
          %s147 = scalar_lea.sflag [#allocation4], %s146
          %s148 = sand.u32 %s50, 1
          %s149 = smul.addr %s148, 4
          %s150 = scalar_lea.vmem [#allocation3], %s149
          %s151 = sadd.s32 %s25, %s26
          %s153 = ssub.s32 64, 64
          %154 = vsyncadd %s147, %s153
          %s155 = smul.addr %s24, 2
          %s156 = sadd.s32 %s151, %s155
          %s157 = smul.addr %s156, 32
          %s158 = scalar_lea.hbm %s0, %s157
          %s159 = sshll.u32 %s150, 4
          %s160 = int_to_ptr.vmem [resolvable:$true] %s159
          %165 = dma.hbm_to_vmem [thread:$0]  %s158, 64, %s160, %s147, 32, 32, 2
        $region20: #{tpu_custom_call.1} parent=15 // pred_fallthru
          _
        // Predicated region
        $region21: #{tpu_custom_call.1} parent=15 // pred_check
          %p166 = pneg %p90
        $region22: #{tpu_custom_call.1} parent=15 // pred_check_branch
          %168 = sbr.rel (%p166) target = $region24
        $region23: #{tpu_custom_call.1} parent=15 // pred_region
          %s169 = sand.u32 %s80, 1
          %s170 = scalar_lea.sflag [#allocation7], %s169
          %s171 = sand.u32 %s80, 1
          %s172 = smul.addr %s171, 4
          %s173 = scalar_lea.vmem [#allocation6], %s172
          %s174 = sadd.s32 %s25, %s26
          %s176 = ssub.s32 64, 64
          %177 = vsyncadd %s170, %s176
          %s178 = smul.addr %s24, 2
          %s179 = sadd.s32 %s174, %s178
          %s180 = smul.addr %s179, 32
          %s181 = scalar_lea.hbm %s1, %s180
          %s182 = sshll.u32 %s173, 4
          %s183 = int_to_ptr.vmem [resolvable:$true] %s182
          %188 = dma.hbm_to_vmem [thread:$0]  %s181, 64, %s183, %s170, 32, 32, 2
        $region24: #{tpu_custom_call.1} parent=15 // pred_fallthru
          _
      $region16: #{tpu_custom_call.1} parent=5 // pred_fallthru
        _
      %p189 = scmp.le.s32.totalorder 1, %s17
      %p190 = scmp.lt.s32.totalorder %s17, 3
      %p191 = pnand %p189, %p190
      %p192 = pneg %p191
      // Predicated region
      $region25: #{tpu_custom_call.1} parent=5 // pred_check
        _
      $region26: #{tpu_custom_call.1} parent=5 // pred_check_branch
        %194 = sbr.rel (%p191) target = $region28
      $region27: #{tpu_custom_call.1} parent=5 // pred_region
        %s195 = ssub.s32 %s17, 1
        %s196 = sand.u32 %s53, 1
        %s197 = scalar_lea.sflag [#allocation4], %s196
        %s198 = sand.u32 %s53, 1
        %s199 = smul.addr %s198, 4
        %s200 = scalar_lea.vmem [#allocation3], %s199
        // Predicated region
        $region29: #{tpu_custom_call.1} parent=27 // pred_check
          %p201 = pneg %p66
        $region30: #{tpu_custom_call.1} parent=27 // pred_check_branch
          %203 = sbr.rel (%p201) target = $region32
        $region31: #{tpu_custom_call.1} parent=27 // pred_region
          %204 = dma.done %s197, 64
        $region32: #{tpu_custom_call.1} parent=27 // pred_fallthru
          _
        %s205 = sand.u32 %s83, 1
        %s206 = scalar_lea.sflag [#allocation7], %s205
        %s207 = sand.u32 %s83, 1
        %s208 = smul.addr %s207, 4
        %s209 = scalar_lea.vmem [#allocation6], %s208
        // Predicated region
        $region33: #{tpu_custom_call.1} parent=27 // pred_check
          %p210 = pneg %p96
        $region34: #{tpu_custom_call.1} parent=27 // pred_check_branch
          %212 = sbr.rel (%p210) target = $region36
        $region35: #{tpu_custom_call.1} parent=27 // pred_region
          %213 = dma.done %s206, 64
        $region36: #{tpu_custom_call.1} parent=27 // pred_fallthru
          _
        %s214 = sand.u32 %s53, 1
        %s215 = scalar_lea.sflag [#allocation4], %s214
        %s216 = sand.u32 %s53, 1
        %s217 = smul.addr %s216, 4
        %s218 = scalar_lea.vmem [#allocation3], %s217
        %p219 = pneg %p66
        %p220 = pneg %p63
        %s221 = sand.u32 %s83, 1
        %s222 = scalar_lea.sflag [#allocation7], %s221
        %s223 = sand.u32 %s83, 1
        %s224 = smul.addr %s223, 4
        %s225 = scalar_lea.vmem [#allocation6], %s224
        %p226 = pneg %p96
        %p227 = pneg %p93
        %p228 = pneg %p124
        %p229 = pneg %p121
        %s230 = sand.u32 %s111, 1
        %s231 = scalar_lea.sflag [#allocation5], %s230
        %s232 = sand.u32 %s111, 1
        %s233 = smul.addr %s232, 6
        %s234 = scalar_lea.vmem [#allocation8], %s233
        %s235 = sadd.s32 %s28, %s29
        %s236 = sadd.s32 %s28, %s29
        %p237 = scmp.eq.s32.totalorder %s29, 0
        // Predicated region
        $region37: #{tpu_custom_call.1} parent=27 // pred_check
          %p238 = pneg %p237
        $region38: #{tpu_custom_call.1} parent=27 // pred_check_branch
          %240 = sbr.rel (%p238) target = $region40
        $region39: #{tpu_custom_call.1} parent=27 // pred_region
          %241 = vst [vmem:[#allocation2] sm:$0x3] 0.0
          %242 = vst [vmem:[#allocation2 + $0x2] sm:$0x3] 0.0
          %243 = vst [vmem:[#allocation2 + $0x4] sm:$0x3] 0.0
        $region40: #{tpu_custom_call.1} parent=27 // pred_fallthru
          _
        %s244 = scalar_lea.vmem %s200, 2 [#allocation3]
        %v245 = vld [vmem:[%s244] sm:$0x3]
        %s246 = scalar_lea.vmem %s209, 2 [#allocation6]
        %v247 = vld [vmem:[%s246] sm:$0x3]
        %v248 = vld [vmem:[%s209] sm:$0x3]
        %v249 = vmul.f32 %v245, 0.5
        %v250 = vtanh.pop %v249
        %v251 = vmul.f32 %v250, 0.5
        %v252 = vadd.f32 %v251, 0.5
        %v253 = vld [vmem:[#allocation2] sm:$0x3]
        %v254 = vmul.f32 %v252, %v247
        %v255 = vadd.f32 %v253, %v254
        %256 = vst [vmem:[#allocation2] sm:$0x3] %v255
        %s257 = scalar_lea.vmem [#allocation2], 2
        %v258 = vld [vmem:[%s257] sm:$0x3]
        %v259 = vmul.f32 %v252, %v248
        %v260 = vadd.f32 %v258, %v259
        %261 = vst [vmem:[%s257] sm:$0x3] %v260
        %v262 = vld [vmem:[%s200] sm:$0x3]
        %v263 = vmul.f32 %v262, 0.5
        %v264 = vtanh.pop %v263
        %v265 = vmul.f32 %v264, 0.5
        %v266 = vadd.f32 %v265, 0.5
        %s267 = scalar_lea.vmem [#allocation2], 4
        %v268 = vld [vmem:[%s267] sm:$0x3]
        %v269 = vmul.f32 %v247, %v266
        %v270 = vadd.f32 %v268, %v269
        %271 = vst [vmem:[%s267] sm:$0x3] %v270
        // Predicated region
        $region41: #{tpu_custom_call.1} parent=27 // pred_check
          %p272 = pneg %p237
        $region42: #{tpu_custom_call.1} parent=27 // pred_check_branch
          %274 = sbr.rel (%p272) target = $region44
        $region43: #{tpu_custom_call.1} parent=27 // pred_region
          %v275 = vld [vmem:[#allocation2] sm:$0x3]
          %v276 = vld [vmem:[#allocation2 + $0x2] sm:$0x3]
          %v277 = vld [vmem:[#allocation2 + $0x4] sm:$0x3]
          %278 = vst [vmem:[%s234] sm:$0x3] %v275
          %279 = vst [vmem:[%s234 + $0x2] sm:$0x3] %v276
          %280 = vst [vmem:[%s234 + $0x4] sm:$0x3] %v277
        $region44: #{tpu_custom_call.1} parent=27 // pred_fallthru
          _
        %s281 = sand.u32 %s111, 1
        %s282 = scalar_lea.sflag [#allocation5], %s281
        %s283 = sand.u32 %s111, 1
        %s284 = smul.addr %s283, 6
        %s285 = scalar_lea.vmem [#allocation8], %s284
        // Predicated region
        $region45: #{tpu_custom_call.1} parent=27 // pred_check
          %p286 = pneg %p121
        $region46: #{tpu_custom_call.1} parent=27 // pred_check_branch
          %288 = sbr.rel (%p286) target = $region48
        $region47: #{tpu_custom_call.1} parent=27 // pred_region
          %s290 = ssub.s32 96, 96
          %291 = vsyncadd %s282, %s290
          %s292 = smul.addr %s28, 3
          %s293 = smul.addr %s27, 3
          %s294 = sadd.s32 %s292, %s293
          %s295 = smul.addr %s294, 32
          %s296 = scalar_lea.hbm %s2, %s295
          %s297 = sshll.u32 %s285, 4
          %s298 = int_to_ptr.vmem [resolvable:$true] %s297
          %303 = dma.vmem_to_hbm [thread:$0]  %s298, 96, %s296, %s282, 32, 32, 2
        $region48: #{tpu_custom_call.1} parent=27 // pred_fallthru
          _
      $region28: #{tpu_custom_call.1} parent=5 // pred_fallthru
        _
      %p304 = scmp.le.s32.totalorder 2, %s17
      // Predicated region
      $region49: #{tpu_custom_call.1} parent=5 // pred_check
        %p305 = pneg %p304
      $region50: #{tpu_custom_call.1} parent=5 // pred_check_branch
        %307 = sbr.rel (%p305) target = $region52
      $region51: #{tpu_custom_call.1} parent=5 // pred_region
        %s308 = ssub.s32 %s17, 2
        // Predicated region
        $region53: #{tpu_custom_call.1} parent=51 // pred_check
          %p309 = pneg %p127
        $region54: #{tpu_custom_call.1} parent=51 // pred_check_branch
          %311 = sbr.rel (%p309) target = $region56
        $region55: #{tpu_custom_call.1} parent=51 // pred_region
          %s312 = sand.u32 %s112, 1
          %s313 = scalar_lea.sflag [#allocation5], %s312
          %s314 = sand.u32 %s112, 1
          %s315 = smul.addr %s314, 6
          %s316 = scalar_lea.vmem [#allocation8], %s315
          %317 = dma.done %s313, 96
        $region56: #{tpu_custom_call.1} parent=51 // pred_fallthru
          _
      $region52: #{tpu_custom_call.1} parent=5 // pred_fallthru
        _
    $region6: #{tpu_custom_call.1} parent=1 // loop_footer
      %s21 = sadd.s32 1, %s17
    $region7: #{tpu_custom_call.1} parent=1 // loop_footer_branch
      %16 = sbr.rel target = $region3
    $region8: #{tpu_custom_call.1} parent=1 // loop_exit
      _
    %318 = vsyncpa [#allocation4], 1
    %s319 = scalar_lea.sflag [#allocation4], 1
    %320 = vsyncpa %s319, 1
    %321 = vsyncpa [#allocation7], 1
    %s322 = scalar_lea.sflag [#allocation7], 1
    %323 = vsyncpa %s322, 1
    %324 = vsyncpa [#allocation5], 1
    %s325 = scalar_lea.sflag [#allocation5], 1
    %326 = vsyncpa %s325, 1

</llo_original>
